<compile_context>
chip_gen: v7x
topology: tpu7x:2x2x1
jax: 0.10.0
libtpu: 0.0.40
codegen_flags: <defaults>
</compile_context>

<pallas_src>
import functools

import jax
import jax.numpy as jnp
from jax.experimental import pallas as pl
from jax.experimental.pallas import tpu as pltpu

LANES = 128
SUBLANES = 8


def _round_up(a, b):
    return ((a + b - 1) // b) * b


def _default_num_splits():
    """2 on chips with two TensorCores per Pallas device (v7x, v4 megacore)."""
    try:
        kind = jax.devices()[0].device_kind.lower()
    except Exception:
        return 1
    if "v7" in kind:
        return 2
    if "v4" in kind and "lite" not in kind:
        return 2
    return 1


def _cosine_loss_kernel(x_ref, y_ref, out_ref, *, p, degrees, tile_rows,
                        chunk_rows, steps_per_split, rows_valid, needs_mask):
    s = pl.program_id(1)

    @pl.when(s == 0)
    def _():
        out_ref[...] = jnp.zeros_like(out_ref)

    # virtual (unclamped) first row of this tile inside the [rows8, 128] slab
    tile_row0 = (pl.program_id(0) * steps_per_split + s) * tile_rows

    deg2rad = jnp.float32(jnp.pi / 180.0)

    def chunk_partial(ci):
        r0 = ci * chunk_rows
        if not isinstance(ci, int):
            r0 = pl.multiple_of(r0, chunk_rows)
        xv = x_ref[pl.ds(r0, chunk_rows), :].astype(jnp.float32)
        yv = y_ref[pl.ds(r0, chunk_rows), :].astype(jnp.float32)
        diff = xv - yv
        if degrees:
            # fold deg->rad into the difference: one multiply per element.
            diff = diff * deg2rad
        val = 1.0 - jnp.cos(diff)
        if p != 1:
            val = val ** p  # static integer power, matches torch `** self.p`
        if needs_mask:
            # Mask rows beyond the real slab (partial tail tile / phantom
            # tiles from the core split).  Zero-padded rows *inside* the slab
            # already contribute (1 - cos(0))**p == 0 for integer p >= 1.
            row_ids = (tile_row0 + r0 +
                       jax.lax.broadcasted_iota(jnp.int32,
                                                (chunk_rows, LANES), 0))
            val = jnp.where(row_ids < rows_valid, val, 0.0)
        # fold (chunk_rows, 128) -> (8, 128) with VPU adds only; the single
        # cross-lane reduce happens outside the kernel on the tiny partials.
        return val.reshape(chunk_rows // SUBLANES, SUBLANES, LANES).sum(axis=0)

    n_chunks = tile_rows // chunk_rows
    if n_chunks == 1:
        acc = chunk_partial(0)
    else:
        acc = jax.lax.fori_loop(
            0, n_chunks, lambda ci, a: a + chunk_partial(ci),
            jnp.zeros((SUBLANES, LANES), jnp.float32), unroll=2)

    out_ref[...] += acc


def cosine_loss(x, y, *, p=1, degrees=False, scale=1, tile_rows=2048,
                num_splits=None, num_buffers=2):
    assert x.shape == y.shape, "x and y must have the same shape"
    assert isinstance(p, int) and p >= 1, "p must be a Python int >= 1"
    total = int(x.size)
    assert total > 0, "inputs must be non-empty"

    xf = x.reshape(-1)
    yf = y.reshape(-1)

    # Lane-dense [rows8, 128] slab; pad only to the next (8,128)-tile multiple
    # (<= 1151 elements).  No pad (hence no HBM copy) when total % 1024 == 0.
    rows = pl.cdiv(total, LANES)
    rows8 = _round_up(rows, SUBLANES)
    slab_elems = rows8 * LANES
    if slab_elems != total:
        xf = jnp.pad(xf, (0, slab_elems - total))
        yf = jnp.pad(yf, (0, slab_elems - total))
    x2 = xf.reshape(rows8, LANES)
    y2 = yf.reshape(rows8, LANES)

    # ---- tile-size selection -------------------------------------------
    nbuf = max(2, int(num_buffers))
    itemsize = max(jnp.dtype(x.dtype).itemsize, jnp.dtype(y.dtype).itemsize)
    # keep the pipelined input footprint (2 inputs x nbuf buffers) <= ~12 MiB
    # so v5e's 16 MiB scoped-VMEM default is never exceeded.
    vmem_cap_rows = max(
        SUBLANES,
        ((12 * 1024 * 1024) // (2 * nbuf * LANES * itemsize))
        // SUBLANES * SUBLANES)
    tile_rows = max(SUBLANES,
                    min(_round_up(int(tile_rows), SUBLANES), rows8,
                        vmem_cap_rows))

    chunk_rows = SUBLANES
    for cand in (64, 32, 16, 8):
        if tile_rows % cand == 0:
            chunk_rows = cand
            break

    # ---- grid: (TensorCore split, row tiles) ------------------------------
    if num_splits is None:
        num_splits = _default_num_splits()
    total_tiles = pl.cdiv(rows8, tile_rows)
    num_splits = max(1, min(int(num_splits), total_tiles))
    steps_per_split = pl.cdiv(total_tiles, num_splits)
    # mask needed iff the grid over-covers the slab (partial tail tile or
    # phantom tiles created by the core split).
    needs_mask = (num_splits * steps_per_split * tile_rows) != rows8
    last_tile = total_tiles - 1

    def in_index_map(c, s):
        # clamp phantom tiles (past the slab) to a real block; their
        # contribution is zeroed by the in-kernel row mask.
        return (jnp.minimum(c * steps_per_split + s, last_tile), 0)

    def make_in_spec():
        if nbuf != 2:
            return pl.BlockSpec((tile_rows, LANES), in_index_map,
                                pipeline_mode=pl.Buffered(nbuf))
        return pl.BlockSpec((tile_rows, LANES), in_index_map)

    kernel = functools.partial(
        _cosine_loss_kernel, p=p, degrees=bool(degrees), tile_rows=tile_rows,
        chunk_rows=chunk_rows, steps_per_split=steps_per_split,
        rows_valid=rows8, needs_mask=needs_mask)

    flops_per_elem = 3 + (1 if degrees else 0) + (p - 1)
    cost = pl.CostEstimate(
        flops=int(flops_per_elem) * total,
        transcendentals=total,
        bytes_accessed=int(x2.size) * int(jnp.dtype(x.dtype).itemsize)
        + int(y2.size) * int(jnp.dtype(y.dtype).itemsize)
        + num_splits * SUBLANES * LANES * 4)

    partials = pl.pallas_call(
        kernel,
        out_shape=jax.ShapeDtypeStruct((num_splits * SUBLANES, LANES),
                                       jnp.float32),
        grid_spec=pltpu.PrefetchScalarGridSpec(
            num_scalar_prefetch=0,
            grid=(num_splits, steps_per_split),
            in_specs=[make_in_spec(), make_in_spec()],
            out_specs=pl.BlockSpec((SUBLANES, LANES), lambda c, s: (c, 0)),
        ),
        compiler_params=pltpu.CompilerParams(
            dimension_semantics=("parallel", "arbitrary")),
        cost_estimate=cost,
    )(x2, y2)

    # combine per-core partials; tiny single reduce + mean + scale in XLA.
    return (jnp.sum(partials) / jnp.float32(total)) * jnp.float32(scale)


if __name__ == "__main__":
    key = jax.random.PRNGKey(0)
    kx, ky = jax.random.split(key)

    # Primary: shapes consistent with an "angle" regression head (NCHW-like).
    x = jax.random.uniform(kx, (2, 4, 16, 16), dtype=jnp.float32,
                           minval=-jnp.pi, maxval=jnp.pi)
    y = jax.random.uniform(ky, (2, 4, 16, 16), dtype=jnp.float32,
                           minval=-jnp.pi, maxval=jnp.pi)
    loss = cosine_loss(x, y, p=1, degrees=False, scale=1)
    jax.block_until_ready(loss)
    ref = jnp.mean((1.0 - jnp.cos(x - y)) ** 1) * 1.0
    assert jnp.allclose(loss, ref, rtol=1e-5, atol=1e-5), (loss, ref)

    # Secondary: awkward element count + forced small tile + forced 2-way core
    # split — exercises the chunked fori_loop and tail/phantom-tile masking.
    kx2, ky2 = jax.random.split(jax.random.PRNGKey(1))
    x2 = jax.random.uniform(kx2, (25, 680), dtype=jnp.float32,
                            minval=-jnp.pi, maxval=jnp.pi)
    y2 = jax.random.uniform(ky2, (25, 680), dtype=jnp.float32,
                            minval=-jnp.pi, maxval=jnp.pi)
    loss2 = cosine_loss(x2, y2, p=1, degrees=False, scale=1,
                        tile_rows=128, num_splits=2)
    jax.block_until_ready(loss2)
    ref2 = jnp.mean((1.0 - jnp.cos(x2 - y2)) ** 1) * 1.0
    assert jnp.allclose(loss2, ref2, rtol=1e-5, atol=1e-5), (loss2, ref2)

    # Tertiary: degrees=True, p=2, scale=3, tiny awkward shape.
    kx3, ky3 = jax.random.split(jax.random.PRNGKey(2))
    x3 = jax.random.uniform(kx3, (3, 5, 7), dtype=jnp.float32,
                            minval=-180.0, maxval=180.0)
    y3 = jax.random.uniform(ky3, (3, 5, 7), dtype=jnp.float32,
                            minval=-180.0, maxval=180.0)
    loss3 = cosine_loss(x3, y3, p=2, degrees=True, scale=3)
    jax.block_until_ready(loss3)
    d3 = jnp.deg2rad(x3) - jnp.deg2rad(y3)
    ref3 = jnp.mean((1.0 - jnp.cos(d3)) ** 2) * 3.0
    assert jnp.allclose(loss3, ref3, rtol=1e-4, atol=1e-5), (loss3, ref3)

    print("KERNEL_OK")
</pallas_src>

<mosaic_0001>
module attributes {stable_mosaic.version = 11 : i64} {
  func.func @_cosine_loss_kernel(%arg0: i32, %arg1: i32, %arg2: memref<16x128xf32, #tpu.memory_space<vmem>>, %arg3: memref<16x128xf32, #tpu.memory_space<vmem>>, %arg4: memref<8x128xf32, #tpu.memory_space<vmem>>) attributes {dimension_semantics = [#tpu.dimension_semantics<parallel>, #tpu.dimension_semantics<arbitrary>], iteration_bounds = array<i64: 1, 1>, scalar_prefetch = 0 : i64, scratch_operands = 0 : i64, tpu.core_type = #tpu.core_type<tc>, window_params = [{transform_indices = @transform_0, window_bounds = array<i64: 16, 128>}, {transform_indices = @transform_1, window_bounds = array<i64: 16, 128>}, {transform_indices = @transform_2, window_bounds = array<i64: 8, 128>}]} {
    %c0_i32 = arith.constant 0 : i32
    %0 = arith.cmpi eq, %arg1, %c0_i32 : i32
    %1 = arith.extui %0 : i1 to i32
    %c0_i32_0 = arith.constant 0 : i32
    %2 = arith.cmpi ne, %1, %c0_i32_0 : i32
    scf.if %2 {
      %cst_9 = arith.constant 0.000000e+00 : f32
      %14 = vector.broadcast %cst_9 : f32 to vector<8x128xf32>
      %c0_10 = arith.constant 0 : index
      %c0_11 = arith.constant 0 : index
      %15 = vector.load %arg4[%c0_10, %c0_11] : memref<8x128xf32, #tpu.memory_space<vmem>>, vector<8x128xf32>
      tpu.vector_store %arg4[%c0_10, %c0_11], %14 {strides = array<i32>} : memref<8x128xf32, #tpu.memory_space<vmem>>, vector<8x128xf32>,
    } else {
    }
    %c0 = arith.constant 0 : index
    %c0_1 = arith.constant 0 : index
    %3 = vector.load %arg2[%c0, %c0_1] : memref<16x128xf32, #tpu.memory_space<vmem>>, vector<16x128xf32>
    %c0_2 = arith.constant 0 : index
    %c0_3 = arith.constant 0 : index
    %4 = vector.load %arg3[%c0_2, %c0_3] : memref<16x128xf32, #tpu.memory_space<vmem>>, vector<16x128xf32>
    %5 = arith.subf %3, %4 : vector<16x128xf32>
    %6 = math.cos %5 : vector<16x128xf32>
    %cst = arith.constant 1.000000e+00 : f32
    %7 = vector.broadcast %cst : f32 to vector<16x128xf32>
    %8 = arith.subf %7, %6 : vector<16x128xf32>
    %9 = vector.shape_cast %8 : vector<16x128xf32> to vector<2x8x128xf32>
    %cst_4 = arith.constant dense<0.000000e+00> : vector<8x128xf32>
    %10 = vector.multi_reduction <add>, %9, %cst_4 [0] : vector<2x8x128xf32> to vector<8x128xf32>
    %c0_5 = arith.constant 0 : index
    %c0_6 = arith.constant 0 : index
    %11 = vector.load %arg4[%c0_5, %c0_6] : memref<8x128xf32, #tpu.memory_space<vmem>>, vector<8x128xf32>
    %12 = arith.addf %11, %10 : vector<8x128xf32>
    %c0_7 = arith.constant 0 : index
    %c0_8 = arith.constant 0 : index
    %13 = vector.load %arg4[%c0_7, %c0_8] : memref<8x128xf32, #tpu.memory_space<vmem>>, vector<8x128xf32>
    tpu.vector_store %arg4[%c0_7, %c0_8], %12 {strides = array<i32>} : memref<8x128xf32, #tpu.memory_space<vmem>>, vector<8x128xf32>,
    return
  }
  func.func @transform_0(%arg0: i32, %arg1: i32) -> (i32, i32) {
    %c1_i32 = arith.constant 1 : i32
    %0 = arith.muli %arg0, %c1_i32 : i32
    %1 = arith.addi %0, %arg1 : i32
    %c0_i32 = arith.constant 0 : i32
    %2 = arith.minsi %1, %c0_i32 : i32
    %c0_i32_0 = arith.constant 0 : i32
    %c0_i32_1 = arith.constant 0 : i32
    return %2, %c0_i32_0 : i32, i32
  }
  func.func @transform_1(%arg0: i32, %arg1: i32) -> (i32, i32) {
    %c1_i32 = arith.constant 1 : i32
    %0 = arith.muli %arg0, %c1_i32 : i32
    %1 = arith.addi %0, %arg1 : i32
    %c0_i32 = arith.constant 0 : i32
    %2 = arith.minsi %1, %c0_i32 : i32
    %c0_i32_0 = arith.constant 0 : i32
    %c0_i32_1 = arith.constant 0 : i32
    return %2, %c0_i32_0 : i32, i32
  }
  func.func @transform_2(%arg0: i32, %arg1: i32) -> (i32, i32) {
    %c0_i32 = arith.constant 0 : i32
    %c0_i32_0 = arith.constant 0 : i32
    return %arg0, %c0_i32 : i32, i32
  }
}

</mosaic_0001>

<llo_original>
// kernel: tpu_custom_call.1
$region0: #{tpu_custom_call.1}
  #allocation0 [shape = 'u32[]', space=smem, size = 0x4, offset = 0x4, fixed_abs, tag = 'smem constant byte address 0x4 - core index']
  #allocation1 [shape = 'u32[144,128]{1,0:T(1,128)}', space=vmem, size = 0x12000, scoped, tag = 'internal scratch']
  %s0 = inlined_call_operand.hbm [shape: f32[16,128], index: 0, kind: input, shape index: {}]
  %s1 = inlined_call_operand.hbm [shape: f32[16,128], index: 1, kind: input, shape index: {}]
  %s2 = inlined_call_operand.hbm [shape: f32[8,128], index: 2, kind: output, shape index: {}]
  %s3 = sld [smem:[#allocation0]]
  $region30: #{tpu_custom_call.1} parent=0
    _
  %s5 = ssub.s32 1, %s3
  %s6 = scalar_select 0, %s5, %s3
  $region1: #{tpu_custom_call.1} parent=0
    #allocation2 [shape = 'u8[8192]{0}', space=vmem, size = 0x2000, scoped, tag = 'input window, operand 0, single buffered']
    #allocation3 [shape = 's32[1]{0}', space=sflag, size = 0x4, scoped, tag = 'scoped memory for tpu_custom_call.1']
    #allocation4 [shape = 's32[1]{0}', space=sflag, size = 0x4, scoped, tag = 'scoped memory for tpu_custom_call.1']
    #allocation5 [shape = 'u8[8192]{0}', space=vmem, size = 0x2000, scoped, tag = 'input window, operand 1, single buffered']
    #allocation6 [shape = 's32[1]{0}', space=sflag, size = 0x4, scoped, tag = 'scoped memory for tpu_custom_call.1']
    #allocation7 [shape = 'u8[4096]{0}', space=vmem, size = 0x1000, scoped, tag = 'output window, operand 0, single buffered']
    %7 = vsyncpa [#allocation3], 0
    %8 = vsyncpa [#allocation6], 0
    %9 = vsyncpa [#allocation4], 0
    // Predicated region
    $region2: #{tpu_custom_call.1} parent=1 // pred_check
      _
    $region3: #{tpu_custom_call.1} parent=1 // pred_check_branch
      %11 = sbr.rel (0) target = $region5
    $region4: #{tpu_custom_call.1} parent=1 // pred_region
      %s12 = sadd.s32 0, 0
      %p13 = scmp.lt.s32.totalorder %s12, 0
      %s14 = scalar_select %p13, %s12, 0
      %s15 = smul.u32 2, %s14
      %s17 = ssub.s32 256, 256
      %18 = vsyncadd [#allocation3], %s17
      %s19 = smul.addr %s15, 128
      %s20 = scalar_lea.hbm %s0, %s19
      %s21 = sshll.u32 [#allocation2], 4
      %s22 = int_to_ptr.vmem [resolvable:$true] %s21
      %27 = dma.hbm_to_vmem [thread:$0]  %s20, 256, %s22, [#allocation3], 128, 128, 8
    $region5: #{tpu_custom_call.1} parent=1 // pred_fallthru
      _
    // Predicated region
    $region6: #{tpu_custom_call.1} parent=1 // pred_check
      _
    $region7: #{tpu_custom_call.1} parent=1 // pred_check_branch
      %29 = sbr.rel (0) target = $region9
    $region8: #{tpu_custom_call.1} parent=1 // pred_region
      %s30 = sadd.s32 0, 0
      %p31 = scmp.lt.s32.totalorder %s30, 0
      %s32 = scalar_select %p31, %s30, 0
      %s33 = smul.u32 2, %s32
      %s35 = ssub.s32 256, 256
      %36 = vsyncadd [#allocation6], %s35
      %s37 = smul.addr %s33, 128
      %s38 = scalar_lea.hbm %s1, %s37
      %s39 = sshll.u32 [#allocation5], 4
      %s40 = int_to_ptr.vmem [resolvable:$true] %s39
      %45 = dma.hbm_to_vmem [thread:$0]  %s38, 256, %s40, [#allocation6], 128, 128, 8
    $region9: #{tpu_custom_call.1} parent=1 // pred_fallthru
      _
    // Predicated region
    $region10: #{tpu_custom_call.1} parent=1 // pred_check
      _
    $region11: #{tpu_custom_call.1} parent=1 // pred_check_branch
      %47 = sbr.rel (0) target = $region13
    $region12: #{tpu_custom_call.1} parent=1 // pred_region
      %48 = dma.done [#allocation3], 256
    $region13: #{tpu_custom_call.1} parent=1 // pred_fallthru
      _
    // Predicated region
    $region14: #{tpu_custom_call.1} parent=1 // pred_check
      _
    $region15: #{tpu_custom_call.1} parent=1 // pred_check_branch
      %50 = sbr.rel (0) target = $region17
    $region16: #{tpu_custom_call.1} parent=1 // pred_region
      %51 = dma.done [#allocation6], 256
    $region17: #{tpu_custom_call.1} parent=1 // pred_fallthru
      _
    %s52 = sadd.s32 0, 0
    %p53 = scmp.lt.s32.totalorder %s52, 0
    %s54 = scalar_select %p53, %s52, 0
    %s55 = smul.u32 2, %s54
    %s56 = sadd.s32 0, 0
    %p57 = scmp.lt.s32.totalorder %s56, 0
    %s58 = scalar_select %p57, %s56, 0
    %s59 = smul.u32 2, %s58
    %p60 = scmp.eq.s32.totalorder 0, 0
    // Predicated region
    $region18: #{tpu_custom_call.1} parent=1 // pred_check
      %p61 = pneg %p60
    $region19: #{tpu_custom_call.1} parent=1 // pred_check_branch
      %63 = sbr.rel (%p61) target = $region21
    $region20: #{tpu_custom_call.1} parent=1 // pred_region
      %64 = vst [vmem:[#allocation7] sm:$0xff] 0.0
    $region21: #{tpu_custom_call.1} parent=1 // pred_fallthru
      _
    %v65 = vld [vmem:[#allocation2] sm:$0xff]
    %v66 = vld [vmem:[#allocation2 + $0x8] sm:$0xff]
    %v67 = vld [vmem:[#allocation5] sm:$0xff]
    %v68 = vld [vmem:[#allocation5 + $0x8] sm:$0xff]
    %v69 = vsub.f32 %v65, %v67
    %v70 = vsub.f32 %v66, %v68
    %v71 = vand.u32 2147483647, %v69
    %vm72 = vcmp.le.f32.partialorder %v71, 0.7853982
    %vm73 = vcmp.lt.s32.totalorder %v69, 0
    %v74 = vand.u32 %v69, 2139095040
    %v75 = vshrl.u32 %v74, 23
    %v76 = vsub.s32 %v75, 127
    %v77 = vand.u32 2147483647, %v69
    %v78 = vand.u32 %v77, 8388607
    %v79 = vor.u32 %v78, 8388608
    %v80 = vsub.s32 0, %v79
    %v81 = vadd.s32 %v76, 1
    %vm82 = vcmp.gt.s32.totalorder %v81, 0
    %v83 = vsel %vm82, %v81, 0
    %v84 = vshrl.u32 %v83, 5
    %v85 = vand.u32 %v83, 31
    %v86 = vsub.s32 32, %v85
    %v87 = vshrl.u32 683565275, %v86
    %v88 = vshll.u32 683565275, %v85
    %v89 = vshrl.u32 2475754826, %v86
    %v90 = vor.u32 %v88, %v89
    %v91 = vshll.u32 2475754826, %v85
    %v92 = vshrl.u32 2131351028, %v86
    %v93 = vor.u32 %v91, %v92
    %v94 = vshll.u32 2131351028, %v85
    %v95 = vshrl.u32 2102212464, %v86
    %v96 = vor.u32 %v94, %v95
    %v97 = vshll.u32 2102212464, %v85
    %v98 = vshrl.u32 920167782, %v86
    %v99 = vor.u32 %v97, %v98
    %v100 = vshll.u32 920167782, %v85
    %v101 = vshrl.u32 1326507024, %v86
    %v102 = vor.u32 %v100, %v101
    %vm103 = vcmp.lt.s32.totalorder %v84, 1
    %vm104 = vcmp.lt.s32.totalorder %v84, 2
    %vm105 = vcmp.lt.s32.totalorder %v84, 3
    %vm106 = vcmp.lt.s32.totalorder %v84, 4
    %v107 = vsel %vm103, %v87, %v90
    %v108 = vsel %vm106, %v96, 2102212464
    %v109 = vsel %vm105, %v93, %v108
    %v110 = vsel %vm104, %v107, %v109
    %v111 = vsel %vm103, %v90, %v93
    %v112 = vsel %vm106, %v99, 920167782
    %v113 = vsel %vm105, %v96, %v112
    %v114 = vsel %vm104, %v111, %v113
    %v115 = vsel %vm103, %v93, %v96
    %v116 = vsel %vm106, %v102, 1326507024
    %v117 = vsel %vm105, %v99, %v116
    %v118 = vsel %vm104, %v115, %v117
    %v119 = vshll.u32 %v79, 8
    %v120 = vmul.u32.u64.compose %v119, %v118
    %v121 = vextract.low.u32 %v120
    %v122 = vextract.high.u32 %v120
    %v123 = vmul.u32.u64.compose %v119, %v114
    %v124 = vextract.low.u32 %v123
    %v125 = vextract.high.u32 %v123
    %v126 = vmul.u32 %v119, %v110
    %v127 = vadd.s32 %v122, %v124
    %vm128 = vc.u32 %v122, %v124
    %v129 = vadd.s32 %v125, 1
    %v130 = vsel %vm128, %v129, %v125
    %v131 = vadd.s32 %v126, %v130
    %v132 = vadd.s32 %v131, 536870912
    %v133 = vshrl.u32 %v132, 30
    %v134 = vshll.u32 %v133, 30
    %v135 = vsub.s32 %v131, %v134
    %vm136 = vcmp.lt.s32.totalorder %v135, 0
    %v137 = vsub.s32 0, %v135
    %v138 = vsel %vm136, %v137, %v135
    %v139 = vclz %v138
    %v140 = vsub.s32 %v139, 2
    %vm141 = vcmp.gt.s32.totalorder 0, %v140
    %v142 = vsel %vm141, 0, %v140
    %v143 = vsub.s32 32, %v142
    %v144 = vshll.u32 %v135, %v142
    %v145 = vshrl.u32 %v127, %v143
    %v146 = vor.u32 %v144, %v145
    %v147 = vsub.s32 4294967266, %v142
    %v148 = vadd.s32 %v147, 127
    %v149 = vshll.u32 %v148, 23
    %v150 = vor.u32 4788187, %v149
    %v151 = vand.u32 2147483647, %v150
    %v153 = vcvt.s32.f32 %v146
    %v154 = vmul.f32 %v153, %v151
    %v155 = vxor.u32 %v154, 2147483648
    %v156 = vsel %vm73, %v155, %v154
    %v157 = vsub.s32 4, %v133
    %v158 = vsel %vm73, %v157, %v133
    %v159 = vsel %vm72, %v69, %v156
    %v160 = vsel %vm72, 0, %v158
    %v161 = vcosq.f32.pop %v159
    %v162 = vsinq.f32.pop %v159
    %vm163 = vweird.f32 %v69
    %v164 = vand.u32 %v160, 3
    %vm165 = vcmp.lt.s32.totalorder %v164, 2
    %vm166 = vcmp.eq.s32.totalorder %v164, 0
    %v167 = vxor.u32 %v162, 2147483648
    %v168 = vsel %vm166, %v161, %v167
    %vm169 = vcmp.eq.s32.totalorder %v164, 2
    %v170 = vxor.u32 %v161, 2147483648
    %v171 = vsel %vm169, %v170, %v162
    %v172 = vsel %vm165, %v168, %v171
    %v173 = vsel %vm163, nan, %v172
    %v174 = vand.u32 2147483647, %v70
    %vm175 = vcmp.le.f32.partialorder %v174, 0.7853982
    %vm176 = vcmp.lt.s32.totalorder %v70, 0
    %v177 = vand.u32 %v70, 2139095040
    %v178 = vshrl.u32 %v177, 23
    %v179 = vsub.s32 %v178, 127
    %v180 = vand.u32 2147483647, %v70
    %v181 = vand.u32 %v180, 8388607
    %v182 = vor.u32 %v181, 8388608
    %v183 = vsub.s32 0, %v182
    %v184 = vadd.s32 %v179, 1
    %vm185 = vcmp.gt.s32.totalorder %v184, 0
    %v186 = vsel %vm185, %v184, 0
    %v187 = vshrl.u32 %v186, 5
    %v188 = vand.u32 %v186, 31
    %v189 = vsub.s32 32, %v188
    %v190 = vshrl.u32 683565275, %v189
    %v191 = vshll.u32 683565275, %v188
    %v192 = vshrl.u32 2475754826, %v189
    %v193 = vor.u32 %v191, %v192
    %v194 = vshll.u32 2475754826, %v188
    %v195 = vshrl.u32 2131351028, %v189
    %v196 = vor.u32 %v194, %v195
    %v197 = vshll.u32 2131351028, %v188
    %v198 = vshrl.u32 2102212464, %v189
    %v199 = vor.u32 %v197, %v198
    %v200 = vshll.u32 2102212464, %v188
    %v201 = vshrl.u32 920167782, %v189
    %v202 = vor.u32 %v200, %v201
    %v203 = vshll.u32 920167782, %v188
    %v204 = vshrl.u32 1326507024, %v189
    %v205 = vor.u32 %v203, %v204
    %vm206 = vcmp.lt.s32.totalorder %v187, 1
    %vm207 = vcmp.lt.s32.totalorder %v187, 2
    %vm208 = vcmp.lt.s32.totalorder %v187, 3
    %vm209 = vcmp.lt.s32.totalorder %v187, 4
    %v210 = vsel %vm206, %v190, %v193
    %v211 = vsel %vm209, %v199, 2102212464
    %v212 = vsel %vm208, %v196, %v211
    %v213 = vsel %vm207, %v210, %v212
    %v214 = vsel %vm206, %v193, %v196
    %v215 = vsel %vm209, %v202, 920167782
    %v216 = vsel %vm208, %v199, %v215
    %v217 = vsel %vm207, %v214, %v216
    %v218 = vsel %vm206, %v196, %v199
    %v219 = vsel %vm209, %v205, 1326507024
    %v220 = vsel %vm208, %v202, %v219
    %v221 = vsel %vm207, %v218, %v220
    %v222 = vshll.u32 %v182, 8
    %v223 = vmul.u32.u64.compose %v222, %v221
    %v224 = vextract.low.u32 %v223
    %v225 = vextract.high.u32 %v223
    %v226 = vmul.u32.u64.compose %v222, %v217
    %v227 = vextract.low.u32 %v226
    %v228 = vextract.high.u32 %v226
    %v229 = vmul.u32 %v222, %v213
    %v230 = vadd.s32 %v225, %v227
    %vm231 = vc.u32 %v225, %v227
    %v232 = vadd.s32 %v228, 1
    %v233 = vsel %vm231, %v232, %v228
    %v234 = vadd.s32 %v229, %v233
    %v235 = vadd.s32 %v234, 536870912
    %v236 = vshrl.u32 %v235, 30
    %v237 = vshll.u32 %v236, 30
    %v238 = vsub.s32 %v234, %v237
    %vm239 = vcmp.lt.s32.totalorder %v238, 0
    %v240 = vsub.s32 0, %v238
    %v241 = vsel %vm239, %v240, %v238
    %v242 = vclz %v241
    %v243 = vsub.s32 %v242, 2
    %vm244 = vcmp.gt.s32.totalorder 0, %v243
    %v245 = vsel %vm244, 0, %v243
    %v246 = vsub.s32 32, %v245
    %v247 = vshll.u32 %v238, %v245
    %v248 = vshrl.u32 %v230, %v246
    %v249 = vor.u32 %v247, %v248
    %v250 = vsub.s32 4294967266, %v245
    %v251 = vadd.s32 %v250, 127
    %v252 = vshll.u32 %v251, 23
    %v253 = vor.u32 4788187, %v252
    %v254 = vand.u32 2147483647, %v253
    %v256 = vcvt.s32.f32 %v249
    %v257 = vmul.f32 %v256, %v254
    %v258 = vxor.u32 %v257, 2147483648
    %v259 = vsel %vm176, %v258, %v257
    %v260 = vsub.s32 4, %v236
    %v261 = vsel %vm176, %v260, %v236
    %v262 = vsel %vm175, %v70, %v259
    %v263 = vsel %vm175, 0, %v261
    %v264 = vcosq.f32.pop %v262
    %v265 = vsinq.f32.pop %v262
    %vm266 = vweird.f32 %v70
    %v267 = vand.u32 %v263, 3
    %vm268 = vcmp.lt.s32.totalorder %v267, 2
    %vm269 = vcmp.eq.s32.totalorder %v267, 0
    %v270 = vxor.u32 %v265, 2147483648
    %v271 = vsel %vm269, %v264, %v270
    %vm272 = vcmp.eq.s32.totalorder %v267, 2
    %v273 = vxor.u32 %v264, 2147483648
    %v274 = vsel %vm272, %v273, %v265
    %v275 = vsel %vm268, %v271, %v274
    %v276 = vsel %vm266, nan, %v275
    %v277 = vsub.f32 1.0, %v173
    %v278 = vsub.f32 1.0, %v276
    %v279 = vadd.f32 %v277, %v278
    %v280 = vld [vmem:[#allocation7] sm:$0xff]
    %v281 = vadd.f32 %v280, %v279
    %282 = vst [vmem:[#allocation7] sm:$0xff] %v281
    // Predicated region
    $region22: #{tpu_custom_call.1} parent=1 // pred_check
      _
    $region23: #{tpu_custom_call.1} parent=1 // pred_check_branch
      %284 = sbr.rel (0) target = $region25
    $region24: #{tpu_custom_call.1} parent=1 // pred_region
      %s286 = ssub.s32 128, 128
      %287 = vsyncadd [#allocation4], %s286
      %s289 = sshll.u32 [#allocation7], 4
      %s290 = int_to_ptr.vmem [resolvable:$true] %s289
      %292 = dma.vmem_to_hbm [thread:$0]  %s290, 128, %s2, [#allocation4]
    $region25: #{tpu_custom_call.1} parent=1 // pred_fallthru
      _
    // Predicated region
    $region26: #{tpu_custom_call.1} parent=1 // pred_check
      _
    $region27: #{tpu_custom_call.1} parent=1 // pred_check_branch
      %294 = sbr.rel (0) target = $region29
    $region28: #{tpu_custom_call.1} parent=1 // pred_region
      %295 = dma.done [#allocation4], 128
    $region29: #{tpu_custom_call.1} parent=1 // pred_fallthru
      _
    %296 = vsyncpa [#allocation3], 1
    %297 = vsyncpa [#allocation6], 1
    %298 = vsyncpa [#allocation4], 1

</llo_original>
